<compile_context>
chip_gen: v6e
topology: v6e:2x2x1
jax: 0.10.0
libtpu: 0.0.40
codegen_flags: <defaults>
</compile_context>

<pallas_src>
import functools

import numpy as np
import jax
import jax.numpy as jnp
from jax import lax
from jax.experimental import pallas as pl
from jax.experimental.pallas import tpu as pltpu


# ----------------------------------------------------------------------------
# Deterministic parameter construction (mirrors the PyTorch __init__ logic,
# done in numpy with a fixed seed — no checkpoint loading).
# ----------------------------------------------------------------------------
def sparse_tensor_init(M, N, C, rng):
    W = np.zeros((M, N), dtype=np.float32)
    for i in range(M):
        idx = rng.choice(N, size=C, replace=False)
        vals = 2.0 * rng.random(C).astype(np.float32) - 1.0
        W[i, idx] = vals
    return W


def sparse_recurrent_tensor_init(M, C, rng):
    W = np.zeros((M, M), dtype=np.float32)
    for i in range(M):
        idx = rng.choice(M, size=C, replace=False)
        vals = 2.0 * rng.random(C).astype(np.float32) - 1.0
        W[idx, i] = vals
    return W


def spectral_norm_scaling(W, rho_desired):
    e = np.linalg.eigvals(W)
    rho_curr = np.max(np.abs(e))
    return (W * (rho_desired / rho_curr)).astype(np.float32)


def make_reservoir_params(input_size, units, *, input_scaling=1.0,
                          spectral_radius=0.99, leaky=1.0,
                          connectivity_input=10, connectivity_recurrent=10,
                          effective_rescaling=True, seed=0):
    rng = np.random.default_rng(seed)
    kernel = sparse_tensor_init(input_size, units, connectivity_input, rng)
    kernel = kernel * input_scaling
    W = sparse_recurrent_tensor_init(units, connectivity_recurrent, rng)
    if effective_rescaling and leaky != 1.0:
        I = np.eye(units, dtype=np.float32)
        W = W * leaky + I * (1.0 - leaky)
        W = spectral_norm_scaling(W, spectral_radius)
        W = (W + I * (leaky - 1.0)) * (1.0 / leaky)
    else:
        # default path: distrib == 'uniform', connectivity_recurrent != units
        W = spectral_norm_scaling(W, spectral_radius)
    bias = (2.0 * rng.random(units).astype(np.float32) - 1.0) * input_scaling
    return (jnp.asarray(kernel, jnp.float32),
            jnp.asarray(W, jnp.float32),
            jnp.asarray(bias, jnp.float32))


# ----------------------------------------------------------------------------
# Pallas kernel: time-blocked, projection-hoisted reservoir update.
#   grid=(T // TT,); hidden state carried in a VMEM scratch across grid steps;
#   input projection done once per block as a single (TT*B, I) @ (I, U) dot;
#   the serial inner loop only does h @ W + u_t (+tanh / leaky blend).
# ----------------------------------------------------------------------------
def _reservoir_seq_kernel(x_ref, h0_ref, k_ref, w_ref, b_ref, hs_ref,
                          h_scr, u_scr, *, leaky, nonlin):
    TT, B, I = x_ref.shape

    @pl.when(pl.program_id(0) == 0)
    def _():
        h_scr[...] = h0_ref[...]

    # Hoisted input projection for the whole time block: one MXU-shaped matmul
    # (TT*B rows) plus a single bias broadcast, outside the serial recurrence.
    x_flat = x_ref[...].reshape(TT * B, I)
    u_scr[...] = (jnp.dot(x_flat, k_ref[...],
                          preferred_element_type=jnp.float32)
                  + b_ref[...])

    w = w_ref[...]                                    # resident (U, U) weights

    def step(t, h):
        r = pl.multiple_of(t * B, B)
        u_t = u_scr[pl.ds(r, B), :]                   # (B, U) precomputed x-part
        pre = u_t + jnp.dot(h, w, preferred_element_type=jnp.float32)

        if nonlin == 'tanh':
            out = jnp.tanh(pre)
        else:                                         # 'identity'
            out = pre

        if leaky == 1.0:                              # trace-time specialization
            ht = out
        else:
            ht = h * (1.0 - leaky) + out * leaky

        hs_ref[t] = ht.astype(hs_ref.dtype)           # lane-dense (B, U) store
        return ht

    h_final = lax.fori_loop(0, TT, step, h_scr[...], unroll=True)
    h_scr[...] = h_final                              # carry to next grid step


def reservoir_forward_sequence(xs, h0, kernel, recurrent_kernel, bias,
                               *, leaky=1.0, nonlin='tanh', time_block=None):
    """Run the reservoir over a whole sequence xs: (T, B, I) -> hs: (T, B, U)."""
    if nonlin not in ('tanh', 'identity'):
        raise ValueError('Invalid nonlinearity <<' + nonlin + '>>. '
                         'Only tanh and identity allowed.')
    T, B, I = xs.shape
    U = h0.shape[1]
    TT = T if time_block is None else int(time_block)
    assert T % TT == 0, "time_block must divide the sequence length"
    bias2d = bias.reshape(1, U)

    hs = pl.pallas_call(
        functools.partial(_reservoir_seq_kernel,
                          leaky=float(leaky), nonlin=nonlin),
        out_shape=jax.ShapeDtypeStruct((T, B, U), jnp.float32),
        grid_spec=pltpu.PrefetchScalarGridSpec(
            num_scalar_prefetch=0,
            grid=(T // TT,),
            in_specs=[
                pl.BlockSpec((TT, B, I), lambda t: (t, 0, 0)),  # x: streamed per block
                pl.BlockSpec((B, U), lambda t: (0, 0)),         # h0: resident
                pl.BlockSpec((I, U), lambda t: (0, 0)),         # kernel: resident
                pl.BlockSpec((U, U), lambda t: (0, 0)),         # recurrent kernel: resident
                pl.BlockSpec((1, U), lambda t: (0, 0)),         # bias: resident
            ],
            out_specs=pl.BlockSpec((TT, B, U), lambda t: (t, 0, 0)),
            scratch_shapes=[
                pltpu.VMEM((B, U), jnp.float32),       # carried hidden state
                pltpu.VMEM((TT * B, U), jnp.float32),  # hoisted input projection
            ],
        ),
        compiler_params=pltpu.CompilerParams(
            dimension_semantics=("arbitrary",)),       # time axis is sequential
    )(xs, h0, kernel, recurrent_kernel, bias2d)
    return hs


def reservoir_cell_forward(xt, h_prev, kernel, recurrent_kernel, bias,
                           *, leaky=1.0, nonlin='tanh'):
    """Single-step module forward (xt, h_prev) -> (ht, ht); T == 1 fused kernel."""
    hs = reservoir_forward_sequence(xt[None], h_prev, kernel, recurrent_kernel,
                                    bias, leaky=leaky, nonlin=nonlin,
                                    time_block=1)
    ht = hs[0]
    return ht, ht


# ----------------------------------------------------------------------------
# Pure-JAX references for correctness checking.
# ----------------------------------------------------------------------------
def reservoir_cell_ref(xt, h_prev, kernel, recurrent_kernel, bias,
                       *, leaky=1.0, nonlin='tanh'):
    pre = xt @ kernel + bias + h_prev @ recurrent_kernel
    output = jnp.tanh(pre) if nonlin == 'tanh' else pre
    ht = h_prev * (1.0 - leaky) + output * leaky
    return ht, ht


def reservoir_sequence_ref(xs, h0, kernel, recurrent_kernel, bias,
                           *, leaky=1.0, nonlin='tanh'):
    def step(h, x):
        ht, _ = reservoir_cell_ref(x, h, kernel, recurrent_kernel, bias,
                                   leaky=leaky, nonlin=nonlin)
        return ht, ht
    _, hs = lax.scan(step, h0, xs)
    return hs


if __name__ == "__main__":
    # Small, MXU-friendly shapes.
    batch, input_size, units, seq_len = 8, 16, 128, 16

    key = jax.random.PRNGKey(0)
    kx, kh = jax.random.split(key)
    xs = jax.random.normal(kx, (seq_len, batch, input_size), dtype=jnp.float32)
    h0 = jax.random.normal(kh, (batch, units), dtype=jnp.float32)

    # Default init path (leaky == 1).
    kernel, recurrent_kernel, bias = make_reservoir_params(
        input_size, units,
        input_scaling=1.0, spectral_radius=0.99, leaky=1.0,
        connectivity_input=10, connectivity_recurrent=10, seed=0)

    # 1) Single-step forward (exact module semantics), leaky == 1.0 fast path.
    ht, _ = reservoir_cell_forward(xs[0], h0, kernel, recurrent_kernel, bias,
                                   leaky=1.0)
    ht = jax.block_until_ready(ht)
    ht_ref, _ = reservoir_cell_ref(xs[0], h0, kernel, recurrent_kernel, bias,
                                   leaky=1.0)
    np.testing.assert_allclose(np.asarray(ht), np.asarray(ht_ref),
                               rtol=1e-4, atol=1e-4)

    # 2) Time-blocked sequence kernel: whole sequence in one grid step, and
    #    split into two blocks (exercises the cross-grid-step state carry).
    for tt in (seq_len, seq_len // 2):
        hs = reservoir_forward_sequence(xs, h0, kernel, recurrent_kernel, bias,
                                        leaky=1.0, time_block=tt)
        hs = jax.block_until_ready(hs)
        hs_ref = reservoir_sequence_ref(xs, h0, kernel, recurrent_kernel, bias,
                                        leaky=1.0)
        np.testing.assert_allclose(np.asarray(hs), np.asarray(hs_ref),
                                   rtol=1e-4, atol=1e-4)

    # 3) Leaky < 1 path (with the module's effective_rescaling init branch).
    leaky = 0.5
    kernel_l, recurrent_kernel_l, bias_l = make_reservoir_params(
        input_size, units,
        input_scaling=1.0, spectral_radius=0.99, leaky=leaky,
        connectivity_input=10, connectivity_recurrent=10, seed=0)
    hs = reservoir_forward_sequence(xs, h0, kernel_l, recurrent_kernel_l,
                                    bias_l, leaky=leaky,
                                    time_block=seq_len // 2)
    hs = jax.block_until_ready(hs)
    hs_ref = reservoir_sequence_ref(xs, h0, kernel_l, recurrent_kernel_l,
                                    bias_l, leaky=leaky)
    np.testing.assert_allclose(np.asarray(hs), np.asarray(hs_ref),
                               rtol=1e-4, atol=1e-4)

    print("KERNEL_OK")
</pallas_src>

<mosaic_0001>
module attributes {stable_mosaic.version = 11 : i64} {
  func.func @_reservoir_seq_kernel(%arg0: i32, %arg1: memref<1x8x16xf32, #tpu.memory_space<vmem>>, %arg2: memref<8x128xf32, #tpu.memory_space<vmem>>, %arg3: memref<16x128xf32, #tpu.memory_space<vmem>>, %arg4: memref<128x128xf32, #tpu.memory_space<vmem>>, %arg5: memref<1x128xf32, #tpu.memory_space<vmem>>, %arg6: memref<1x8x128xf32, #tpu.memory_space<vmem>>, %arg7: memref<8x128xf32, #tpu.memory_space<vmem>>, %arg8: memref<8x128xf32, #tpu.memory_space<vmem>>) attributes {dimension_semantics = [#tpu.dimension_semantics<arbitrary>], iteration_bounds = array<i64: 1>, scalar_prefetch = 0 : i64, scratch_operands = 2 : i64, tpu.core_type = #tpu.core_type<tc>, window_params = [{transform_indices = @transform_0, window_bounds = array<i64: 1, 8, 16>}, {pipeline_mode = #tpu.pipeline_mode<synchronous>, transform_indices = @transform_1, window_bounds = array<i64: 8, 128>}, {pipeline_mode = #tpu.pipeline_mode<synchronous>, transform_indices = @transform_2, window_bounds = array<i64: 16, 128>}, {pipeline_mode = #tpu.pipeline_mode<synchronous>, transform_indices = @transform_3, window_bounds = array<i64: 128, 128>}, {pipeline_mode = #tpu.pipeline_mode<synchronous>, transform_indices = @transform_4, window_bounds = array<i64: 1, 128>}, {transform_indices = @transform_5, window_bounds = array<i64: 1, 8, 128>}]} {
    %c0_i32 = arith.constant 0 : i32
    %0 = arith.cmpi eq, %arg0, %c0_i32 : i32
    %1 = arith.extui %0 : i1 to i32
    %c0_i32_0 = arith.constant 0 : i32
    %2 = arith.cmpi ne, %1, %c0_i32_0 : i32
    scf.if %2 {
      %c0_20 = arith.constant 0 : index
      %c0_21 = arith.constant 0 : index
      %25 = vector.load %arg2[%c0_20, %c0_21] : memref<8x128xf32, #tpu.memory_space<vmem>>, vector<8x128xf32>
      %c0_22 = arith.constant 0 : index
      %c0_23 = arith.constant 0 : index
      %26 = vector.load %arg7[%c0_22, %c0_23] : memref<8x128xf32, #tpu.memory_space<vmem>>, vector<8x128xf32>
      tpu.vector_store %arg7[%c0_22, %c0_23], %25 {strides = array<i32>} : memref<8x128xf32, #tpu.memory_space<vmem>>, vector<8x128xf32>,
    } else {
    }
    %c0 = arith.constant 0 : index
    %c0_1 = arith.constant 0 : index
    %c0_2 = arith.constant 0 : index
    %3 = vector.load %arg1[%c0, %c0_1, %c0_2] : memref<1x8x16xf32, #tpu.memory_space<vmem>>, vector<1x8x16xf32>
    %4 = vector.shape_cast %3 : vector<1x8x16xf32> to vector<8x16xf32>
    %c0_3 = arith.constant 0 : index
    %c0_4 = arith.constant 0 : index
    %5 = vector.load %arg3[%c0_3, %c0_4] : memref<16x128xf32, #tpu.memory_space<vmem>>, vector<16x128xf32>
    %cst = arith.constant dense<0.000000e+00> : vector<8x128xf32>
    %6 = tpu.matmul %4, %5, %cst {dimension_numbers = #tpu.dot_dimension_numbers<[1], [0], [0], [1], [0, 0, 1, 1], [], []>} : vector<8x16xf32>, vector<16x128xf32>, vector<8x128xf32> -> vector<8x128xf32>
    %c0_5 = arith.constant 0 : index
    %c0_6 = arith.constant 0 : index
    %7 = vector.load %arg5[%c0_5, %c0_6] : memref<1x128xf32, #tpu.memory_space<vmem>>, vector<1x128xf32>
    %8 = vector.broadcast %7 : vector<1x128xf32> to vector<8x128xf32>
    %9 = arith.addf %6, %8 : vector<8x128xf32>
    %c0_7 = arith.constant 0 : index
    %c0_8 = arith.constant 0 : index
    %10 = vector.load %arg8[%c0_7, %c0_8] : memref<8x128xf32, #tpu.memory_space<vmem>>, vector<8x128xf32>
    tpu.vector_store %arg8[%c0_7, %c0_8], %9 {strides = array<i32>} : memref<8x128xf32, #tpu.memory_space<vmem>>, vector<8x128xf32>,
    %c0_9 = arith.constant 0 : index
    %c0_10 = arith.constant 0 : index
    %11 = vector.load %arg4[%c0_9, %c0_10] : memref<128x128xf32, #tpu.memory_space<vmem>>, vector<128x128xf32>
    %c0_11 = arith.constant 0 : index
    %c0_12 = arith.constant 0 : index
    %12 = vector.load %arg7[%c0_11, %c0_12] : memref<8x128xf32, #tpu.memory_space<vmem>>, vector<8x128xf32>
    %c0_i32_13 = arith.constant 0 : i32
    %c8_i32 = arith.constant 8 : i32
    %13 = arith.muli %c0_i32_13, %c8_i32 : i32
    %14 = tpu.assume_multiple %13, 8 : i32
    %15 = arith.index_cast %14 : i32 to index
    %c0_14 = arith.constant 0 : index
    %16 = vector.load %arg8[%15, %c0_14] : memref<8x128xf32, #tpu.memory_space<vmem>>, vector<8x128xf32>
    %cst_15 = arith.constant dense<0.000000e+00> : vector<8x128xf32>
    %17 = tpu.matmul %12, %11, %cst_15 {dimension_numbers = #tpu.dot_dimension_numbers<[1], [0], [0], [1], [0, 0, 1, 1], [], []>} : vector<8x128xf32>, vector<128x128xf32>, vector<8x128xf32> -> vector<8x128xf32>
    %18 = arith.addf %16, %17 : vector<8x128xf32>
    %19 = math.tanh %18 : vector<8x128xf32>
    %20 = arith.index_cast %c0_i32_13 : i32 to index
    %c0_16 = arith.constant 0 : index
    %c0_17 = arith.constant 0 : index
    %21 = vector.load %arg6[%20, %c0_16, %c0_17] : memref<1x8x128xf32, #tpu.memory_space<vmem>>, vector<1x8x128xf32>
    %22 = vector.shape_cast %21 : vector<1x8x128xf32> to vector<8x128xf32>
    %23 = vector.shape_cast %19 : vector<8x128xf32> to vector<1x8x128xf32>
    tpu.vector_store %arg6[%20, %c0_16, %c0_17], %23 {strides = array<i32>} : memref<1x8x128xf32, #tpu.memory_space<vmem>>, vector<1x8x128xf32>,
    %c1_i32 = arith.constant 1 : i32
    %c0_18 = arith.constant 0 : index
    %c0_19 = arith.constant 0 : index
    %24 = vector.load %arg7[%c0_18, %c0_19] : memref<8x128xf32, #tpu.memory_space<vmem>>, vector<8x128xf32>
    tpu.vector_store %arg7[%c0_18, %c0_19], %19 {strides = array<i32>} : memref<8x128xf32, #tpu.memory_space<vmem>>, vector<8x128xf32>,
    return
  }
  func.func @transform_0(%arg0: i32) -> (i32, i32, i32) {
    %c0_i32 = arith.constant 0 : i32
    %c0_i32_0 = arith.constant 0 : i32
    %c0_i32_1 = arith.constant 0 : i32
    return %arg0, %c0_i32, %c0_i32_0 : i32, i32, i32
  }
  func.func @transform_1(%arg0: i32) -> (i32, i32) {
    %c0_i32 = arith.constant 0 : i32
    %c0_i32_0 = arith.constant 0 : i32
    %c0_i32_1 = arith.constant 0 : i32
    return %c0_i32, %c0_i32_0 : i32, i32
  }
  func.func @transform_2(%arg0: i32) -> (i32, i32) {
    %c0_i32 = arith.constant 0 : i32
    %c0_i32_0 = arith.constant 0 : i32
    %c0_i32_1 = arith.constant 0 : i32
    return %c0_i32, %c0_i32_0 : i32, i32
  }
  func.func @transform_3(%arg0: i32) -> (i32, i32) {
    %c0_i32 = arith.constant 0 : i32
    %c0_i32_0 = arith.constant 0 : i32
    %c0_i32_1 = arith.constant 0 : i32
    return %c0_i32, %c0_i32_0 : i32, i32
  }
  func.func @transform_4(%arg0: i32) -> (i32, i32) {
    %c0_i32 = arith.constant 0 : i32
    %c0_i32_0 = arith.constant 0 : i32
    %c0_i32_1 = arith.constant 0 : i32
    return %c0_i32, %c0_i32_0 : i32, i32
  }
  func.func @transform_5(%arg0: i32) -> (i32, i32, i32) {
    %c0_i32 = arith.constant 0 : i32
    %c0_i32_0 = arith.constant 0 : i32
    %c0_i32_1 = arith.constant 0 : i32
    return %arg0, %c0_i32, %c0_i32_0 : i32, i32, i32
  }
}

</mosaic_0001>

<llo_original>
// kernel: tpu_custom_call.1
$region0: #{tpu_custom_call.1}
  #allocation0 [shape = 'u32[]', space=smem, size = 0x4, offset = 0x4, fixed_abs, tag = 'smem constant byte address 0x4 - core index']
  #allocation1 [shape = 'u32[144,128]{1,0:T(1,128)}', space=vmem, size = 0x12000, scoped, tag = 'internal scratch']
  #allocation2 [shape = 'f32[8,128]{1,0:T(8,128)}', space=vmem, size = 0x1000, scoped, tag = 'scratch operand']
  #allocation3 [shape = 'f32[8,128]{1,0:T(8,128)}', space=vmem, size = 0x1000, scoped, tag = 'scratch operand']
  %s0 = inlined_call_operand.hbm [shape: f32[1,8,16], index: 0, kind: input, shape index: {}]
  %s1 = inlined_call_operand.hbm [shape: f32[8,128], index: 1, kind: input, shape index: {}]
  %s2 = inlined_call_operand.hbm [shape: f32[16,128], index: 2, kind: input, shape index: {}]
  %s3 = inlined_call_operand.hbm [shape: f32[128,128], index: 3, kind: input, shape index: {}]
  %s4 = inlined_call_operand.vmem [shape: f32[1,128], index: 4, kind: input, shape index: {}]
  %s5 = inlined_call_operand.hbm [shape: f32[1,8,128], index: 5, kind: output, shape index: {}]
  %s6 = sld [smem:[#allocation0]]
  $region50: #{tpu_custom_call.1} parent=0
    _
  %s8 = ssub.s32 1, %s6
  %s9 = scalar_select 0, %s8, %s6
  $region1: #{tpu_custom_call.1} parent=0
    #allocation4 [shape = 'u8[4096]{0}', space=vmem, size = 0x1000, scoped, tag = 'input window, operand 0, single buffered']
    #allocation5 [shape = 's32[1]{0}', space=sflag, size = 0x4, scoped, tag = 'scoped memory for tpu_custom_call.1']
    #allocation6 [shape = 's32[1]{0}', space=sflag, size = 0x4, scoped, tag = 'scoped memory for tpu_custom_call.1']
    #allocation7 [shape = 'u8[4096]{0}', space=vmem, size = 0x1000, scoped, tag = 'input window, operand 1, single buffered']
    #allocation8 [shape = 's32[1]{0}', space=sflag, size = 0x4, scoped, tag = 'scoped memory for tpu_custom_call.1']
    #allocation9 [shape = 'u8[8192]{0}', space=vmem, size = 0x2000, scoped, tag = 'input window, operand 2, single buffered']
    #allocation10 [shape = 'u8[65536]{0}', space=vmem, size = 0x10000, scoped, tag = 'input window, operand 3, single buffered']
    #allocation11 [shape = 's32[1]{0}', space=sflag, size = 0x4, scoped, tag = 'scoped memory for tpu_custom_call.1']
    #allocation12 [shape = 'u8[4096]{0}', space=vmem, size = 0x1000, scoped, tag = 'output window, operand 0, single buffered']
    %10 = vsyncpa [#allocation5], 0
    %11 = vsyncpa [#allocation8], 0
    %12 = vsyncpa [#allocation11], 0
    %13 = vsyncpa [#allocation6], 0
    // Predicated region
    $region2: #{tpu_custom_call.1} parent=1 // pred_check
      _
    $region3: #{tpu_custom_call.1} parent=1 // pred_check_branch
      %15 = sbr.rel (0) target = $region5
    $region4: #{tpu_custom_call.1} parent=1 // pred_region
      %s17 = ssub.s32 128, 128
      %18 = vsyncadd [#allocation5], %s17
      %s20 = sshll.u32 [#allocation4], 4
      %s21 = int_to_ptr.vmem [resolvable:$true] %s20
      %23 = dma.hbm_to_vmem [thread:$0]  %s0, 128, %s21, [#allocation5]
    $region5: #{tpu_custom_call.1} parent=1 // pred_fallthru
      _
    // Predicated region
    $region6: #{tpu_custom_call.1} parent=1 // pred_check
      _
    $region7: #{tpu_custom_call.1} parent=1 // pred_check_branch
      %25 = sbr.rel (0) target = $region9
    $region8: #{tpu_custom_call.1} parent=1 // pred_region
      %s27 = ssub.s32 128, 128
      %28 = vsyncadd [#allocation8], %s27
      %s30 = sshll.u32 [#allocation7], 4
      %s31 = int_to_ptr.vmem [resolvable:$true] %s30
      %33 = dma.hbm_to_vmem [thread:$0]  %s1, 128, %s31, [#allocation8]
    $region9: #{tpu_custom_call.1} parent=1 // pred_fallthru
      _
    // Predicated region
    $region10: #{tpu_custom_call.1} parent=1 // pred_check
      _
    $region11: #{tpu_custom_call.1} parent=1 // pred_check_branch
      %35 = sbr.rel (0) target = $region13
    $region12: #{tpu_custom_call.1} parent=1 // pred_region
      %s37 = ssub.s32 256, 256
      %38 = vsyncadd [#allocation8], %s37
      %s39 = sshll.u32 [#allocation9], 4
      %s40 = int_to_ptr.vmem [resolvable:$true] %s39
      %45 = dma.hbm_to_vmem [thread:$0]  %s2, 256, %s40, [#allocation8], 128, 128, 8
    $region13: #{tpu_custom_call.1} parent=1 // pred_fallthru
      _
    // Predicated region
    $region14: #{tpu_custom_call.1} parent=1 // pred_check
      _
    $region15: #{tpu_custom_call.1} parent=1 // pred_check_branch
      %47 = sbr.rel (0) target = $region17
    $region16: #{tpu_custom_call.1} parent=1 // pred_region
      %s49 = ssub.s32 2048, 2048
      %50 = vsyncadd [#allocation11], %s49
      %s51 = sshll.u32 [#allocation10], 4
      %s52 = int_to_ptr.vmem [resolvable:$true] %s51
      %57 = dma.hbm_to_vmem [thread:$0]  %s3, 2048, %s52, [#allocation11], 128, 128, 8
    $region17: #{tpu_custom_call.1} parent=1 // pred_fallthru
      _
    // Predicated region
    $region18: #{tpu_custom_call.1} parent=1 // pred_check
      _
    $region19: #{tpu_custom_call.1} parent=1 // pred_check_branch
      %59 = sbr.rel (0) target = $region21
    $region20: #{tpu_custom_call.1} parent=1 // pred_region
      _
    $region21: #{tpu_custom_call.1} parent=1 // pred_fallthru
      _
    // Predicated region
    $region22: #{tpu_custom_call.1} parent=1 // pred_check
      _
    $region23: #{tpu_custom_call.1} parent=1 // pred_check_branch
      %61 = sbr.rel (0) target = $region25
    $region24: #{tpu_custom_call.1} parent=1 // pred_region
      %62 = dma.done [#allocation5], 128
    $region25: #{tpu_custom_call.1} parent=1 // pred_fallthru
      _
    // Predicated region
    $region26: #{tpu_custom_call.1} parent=1 // pred_check
      _
    $region27: #{tpu_custom_call.1} parent=1 // pred_check_branch
      %64 = sbr.rel (0) target = $region29
    $region28: #{tpu_custom_call.1} parent=1 // pred_region
      %65 = dma.done [#allocation8], 128
    $region29: #{tpu_custom_call.1} parent=1 // pred_fallthru
      _
    // Predicated region
    $region30: #{tpu_custom_call.1} parent=1 // pred_check
      _
    $region31: #{tpu_custom_call.1} parent=1 // pred_check_branch
      %67 = sbr.rel (0) target = $region33
    $region32: #{tpu_custom_call.1} parent=1 // pred_region
      %68 = dma.done [#allocation8], 256
    $region33: #{tpu_custom_call.1} parent=1 // pred_fallthru
      _
    // Predicated region
    $region34: #{tpu_custom_call.1} parent=1 // pred_check
      _
    $region35: #{tpu_custom_call.1} parent=1 // pred_check_branch
      %70 = sbr.rel (0) target = $region37
    $region36: #{tpu_custom_call.1} parent=1 // pred_region
      %71 = dma.done [#allocation11], 2048
    $region37: #{tpu_custom_call.1} parent=1 // pred_fallthru
      _
    %p72 = scmp.eq.s32.totalorder 0, 0
    // Predicated region
    $region38: #{tpu_custom_call.1} parent=1 // pred_check
      %p73 = pneg %p72
    $region39: #{tpu_custom_call.1} parent=1 // pred_check_branch
      %75 = sbr.rel (%p73) target = $region41
    $region40: #{tpu_custom_call.1} parent=1 // pred_region
      %v76 = vld [vmem:[#allocation7] sm:$0xff]
      %77 = vst [vmem:[#allocation2] sm:$0xff] %v76
    $region41: #{tpu_custom_call.1} parent=1 // pred_fallthru
      _
    %v78 = vld [vmem:[#allocation4] sm:$0xff]
    %v79 = vld [vmem:[#allocation9] sm:$0xff]
    %v80 = vld [vmem:[#allocation9 + $0x8] sm:$0xff]
    %v81 = vld [vmem:[%s4] sm:$0x1]
    %v83 = vlaneseq
    %v84 = vshrl.u32 %v83, 7
    %v85 = vsub.s32 0, %v84
    %v86 = vrot.slane %v81, %v85
    %vm88 = vcmask 130048
    %v90 = vsel %vm88, %v78, 0
    %92 = vmatprep.subr.mxu0 0.0
    %93 = vmatpush1.msra.mxu0 0.0
    %94 = vmatprep.subr.mxu0 0.0
    %95 = vmatpush1.msra.mxu0 0.0
    %96 = vmatprep.subr.mxu0 0.0
    %97 = vmatpush1.msra.mxu0 0.0
    %98 = vmatprep.subr.mxu0 0.0
    %99 = vmatpush1.msra.mxu0 0.0
    %100 = vmatprep.subr.mxu0 0.0
    %101 = vmatpush1.msra.mxu0 0.0
    %102 = vmatprep.subr.mxu0 0.0
    %103 = vmatpush1.msra.mxu0 0.0
    %104 = vmatprep.subr.mxu0 0.0
    %105 = vmatpush1.msra.mxu0 0.0
    %106 = vmatprep.subr.mxu0 0.0
    %107 = vmatpush1.msra.mxu0 0.0
    %108 = vmatprep.subr.mxu0 0.0
    %109 = vmatpush1.msra.mxu0 0.0
    %110 = vmatprep.subr.mxu0 0.0
    %111 = vmatpush1.msra.mxu0 0.0
    %112 = vmatprep.subr.mxu0 0.0
    %113 = vmatpush1.msra.mxu0 0.0
    %114 = vmatprep.subr.mxu0 0.0
    %115 = vmatpush1.msra.mxu0 0.0
    %116 = vmatprep.subr.mxu0 0.0
    %117 = vmatpush1.msra.mxu0 0.0
    %118 = vmatprep.subr.mxu0 0.0
    %119 = vmatpush1.msra.mxu0 0.0
    %120 = vmatprep.subr.mxu0 0.0
    %121 = vmatpush1.msra.mxu0 %v80
    %122 = vmatprep.subr.mxu0 0.0
    %123 = vmatpush1.msra.mxu0 %v79
    %124 = vmatprep.subr.mxu0 0.0
    %125 = vmatpush2.msra.mxu0 0.0
    %126 = vmatprep.subr.mxu0 0.0
    %127 = vmatpush2.msra.mxu0 0.0
    %128 = vmatprep.subr.mxu0 0.0
    %129 = vmatpush2.msra.mxu0 0.0
    %130 = vmatprep.subr.mxu0 0.0
    %131 = vmatpush2.msra.mxu0 0.0
    %132 = vmatprep.subr.mxu0 0.0
    %133 = vmatpush2.msra.mxu0 0.0
    %134 = vmatprep.subr.mxu0 0.0
    %135 = vmatpush2.msra.mxu0 0.0
    %136 = vmatprep.subr.mxu0 0.0
    %137 = vmatpush2.msra.mxu0 0.0
    %138 = vmatprep.subr.mxu0 0.0
    %139 = vmatpush2.msra.mxu0 0.0
    %140 = vmatprep.subr.mxu0 0.0
    %141 = vmatpush2.msra.mxu0 0.0
    %142 = vmatprep.subr.mxu0 0.0
    %143 = vmatpush2.msra.mxu0 0.0
    %144 = vmatprep.subr.mxu0 0.0
    %145 = vmatpush2.msra.mxu0 0.0
    %146 = vmatprep.subr.mxu0 0.0
    %147 = vmatpush2.msra.mxu0 0.0
    %148 = vmatprep.subr.mxu0 0.0
    %149 = vmatpush2.msra.mxu0 0.0
    %150 = vmatprep.subr.mxu0 0.0
    %151 = vmatpush2.msra.mxu0 0.0
    %152 = vmatprep.subr.mxu0 0.0
    %153 = vmatpush2.msra.mxu0 0.0
    %154 = vmatprep.subr.mxu0 0.0
    %155 = vmatpush2.msra.mxu0 0.0
    %156 = vmatprep.mubr.f32.mxu0 0.0
    %157 = vmatmul.mubr.f32.gmra.mxu0 %v90
    %v158 = vpop.f32.mrf.mxu0
    %v159 = vadd.f32 %v86, %v158
    %v160 = vpop.f32.mrf.mxu0
    %161 = vdwg.mxu0
    %162 = vst [vmem:[#allocation3] sm:$0xff] %v159
    %v163 = vld [vmem:[#allocation10] sm:$0xff]
    %v164 = vld [vmem:[#allocation10 + $0x8] sm:$0xff]
    %v165 = vld [vmem:[#allocation10 + $0x10] sm:$0xff]
    %v166 = vld [vmem:[#allocation10 + $0x18] sm:$0xff]
    %v167 = vld [vmem:[#allocation10 + $0x20] sm:$0xff]
    %v168 = vld [vmem:[#allocation10 + $0x28] sm:$0xff]
    %v169 = vld [vmem:[#allocation10 + $0x30] sm:$0xff]
    %v170 = vld [vmem:[#allocation10 + $0x38] sm:$0xff]
    %v171 = vld [vmem:[#allocation10 + $0x40] sm:$0xff]
    %v172 = vld [vmem:[#allocation10 + $0x48] sm:$0xff]
    %v173 = vld [vmem:[#allocation10 + $0x50] sm:$0xff]
    %v174 = vld [vmem:[#allocation10 + $0x58] sm:$0xff]
    %v175 = vld [vmem:[#allocation10 + $0x60] sm:$0xff]
    %v176 = vld [vmem:[#allocation10 + $0x68] sm:$0xff]
    %v177 = vld [vmem:[#allocation10 + $0x70] sm:$0xff]
    %v178 = vld [vmem:[#allocation10 + $0x78] sm:$0xff]
    %v179 = vld [vmem:[#allocation2] sm:$0xff]
    %v180 = vld [vmem:[#allocation3] sm:$0xff]
    %181 = vmatprep.subr.mxu0 0.0
    %182 = vmatpush1.msra.mxu0 %v178
    %183 = vmatprep.subr.mxu0 0.0
    %184 = vmatpush1.msra.mxu0 %v177
    %185 = vmatprep.subr.mxu0 0.0
    %186 = vmatpush1.msra.mxu0 %v176
    %187 = vmatprep.subr.mxu0 0.0
    %188 = vmatpush1.msra.mxu0 %v175
    %189 = vmatprep.subr.mxu0 0.0
    %190 = vmatpush1.msra.mxu0 %v174
    %191 = vmatprep.subr.mxu0 0.0
    %192 = vmatpush1.msra.mxu0 %v173
    %193 = vmatprep.subr.mxu0 0.0
    %194 = vmatpush1.msra.mxu0 %v172
    %195 = vmatprep.subr.mxu0 0.0
    %196 = vmatpush1.msra.mxu0 %v171
    %197 = vmatprep.subr.mxu0 0.0
    %198 = vmatpush1.msra.mxu0 %v170
    %199 = vmatprep.subr.mxu0 0.0
    %200 = vmatpush1.msra.mxu0 %v169
    %201 = vmatprep.subr.mxu0 0.0
    %202 = vmatpush1.msra.mxu0 %v168
    %203 = vmatprep.subr.mxu0 0.0
    %204 = vmatpush1.msra.mxu0 %v167
    %205 = vmatprep.subr.mxu0 0.0
    %206 = vmatpush1.msra.mxu0 %v166
    %207 = vmatprep.subr.mxu0 0.0
    %208 = vmatpush1.msra.mxu0 %v165
    %209 = vmatprep.subr.mxu0 0.0
    %210 = vmatpush1.msra.mxu0 %v164
    %211 = vmatprep.subr.mxu0 0.0
    %212 = vmatpush1.msra.mxu0 %v163
    %213 = vmatprep.subr.mxu0 0.0
    %214 = vmatpush2.msra.mxu0 0.0
    %215 = vmatprep.subr.mxu0 0.0
    %216 = vmatpush2.msra.mxu0 0.0
    %217 = vmatprep.subr.mxu0 0.0
    %218 = vmatpush2.msra.mxu0 0.0
    %219 = vmatprep.subr.mxu0 0.0
    %220 = vmatpush2.msra.mxu0 0.0
    %221 = vmatprep.subr.mxu0 0.0
    %222 = vmatpush2.msra.mxu0 0.0
    %223 = vmatprep.subr.mxu0 0.0
    %224 = vmatpush2.msra.mxu0 0.0
    %225 = vmatprep.subr.mxu0 0.0
    %226 = vmatpush2.msra.mxu0 0.0
    %227 = vmatprep.subr.mxu0 0.0
    %228 = vmatpush2.msra.mxu0 0.0
    %229 = vmatprep.subr.mxu0 0.0
    %230 = vmatpush2.msra.mxu0 0.0
    %231 = vmatprep.subr.mxu0 0.0
    %232 = vmatpush2.msra.mxu0 0.0
    %233 = vmatprep.subr.mxu0 0.0
    %234 = vmatpush2.msra.mxu0 0.0
    %235 = vmatprep.subr.mxu0 0.0
    %236 = vmatpush2.msra.mxu0 0.0
    %237 = vmatprep.subr.mxu0 0.0
    %238 = vmatpush2.msra.mxu0 0.0
    %239 = vmatprep.subr.mxu0 0.0
    %240 = vmatpush2.msra.mxu0 0.0
    %241 = vmatprep.subr.mxu0 0.0
    %242 = vmatpush2.msra.mxu0 0.0
    %243 = vmatprep.subr.mxu0 0.0
    %244 = vmatpush2.msra.mxu0 0.0
    %245 = vmatprep.mubr.f32.mxu0 0.0
    %246 = vmatmul.mubr.f32.gmra.mxu0 %v179
    %v247 = vpop.f32.mrf.mxu0
    %v248 = vadd.f32 0.0, %v247
    %v249 = vpop.f32.mrf.mxu0
    %250 = vdwg.mxu0
    %v251 = vadd.f32 %v180, %v248
    %v252 = vtanh.pop %v251
    %253 = vst [vmem:[#allocation12] sm:$0xff] %v252
    %254 = vst [vmem:[#allocation2] sm:$0xff] %v252
    // Predicated region
    $region42: #{tpu_custom_call.1} parent=1 // pred_check
      _
    $region43: #{tpu_custom_call.1} parent=1 // pred_check_branch
      %256 = sbr.rel (0) target = $region45
    $region44: #{tpu_custom_call.1} parent=1 // pred_region
      %s258 = ssub.s32 128, 128
      %259 = vsyncadd [#allocation6], %s258
      %s261 = sshll.u32 [#allocation12], 4
      %s262 = int_to_ptr.vmem [resolvable:$true] %s261
      %264 = dma.vmem_to_hbm [thread:$0]  %s262, 128, %s5, [#allocation6]
    $region45: #{tpu_custom_call.1} parent=1 // pred_fallthru
      _
    // Predicated region
    $region46: #{tpu_custom_call.1} parent=1 // pred_check
      _
    $region47: #{tpu_custom_call.1} parent=1 // pred_check_branch
      %266 = sbr.rel (0) target = $region49
    $region48: #{tpu_custom_call.1} parent=1 // pred_region
      %267 = dma.done [#allocation6], 128
    $region49: #{tpu_custom_call.1} parent=1 // pred_fallthru
      _
    %268 = vsyncpa [#allocation5], 1
    %269 = vsyncpa [#allocation8], 1
    %270 = vsyncpa [#allocation11], 1
    %271 = vsyncpa [#allocation6], 1

</llo_original>
